<compile_context>
chip_gen: v7x
topology: tpu7x:2x2x1
jax: 0.10.0
libtpu: 0.0.40
codegen_flags: <defaults>
</compile_context>

<pallas_src>
import math

import jax
import jax.numpy as jnp
from jax.experimental import pallas as pl
from jax.experimental.pallas import tpu as pltpu

_LANE = 128
_SUBLANE = 8


def _round_up(a, b):
    return ((a + b - 1) // b) * b


def _cdiv(a, b):
    return (a + b - 1) // b


def _vmem_capacity_bytes():
    """Physical VMEM per TensorCore; conservative v7x fallback if unknown."""
    try:
        info = pltpu.get_tpu_info()
        for attr in ("vmem_capacity_bytes", "vmem_size_bytes", "vmem_bytes"):
            v = getattr(info, attr, None)
            if v:
                return int(v)
    except Exception:
        pass
    return 64 << 20


def _se_kernel(x_ref, xse_ref, w1_ref, b1_ref, w2_ref, b2_ref, o_ref):
    # Linear(reduce): bf16 operands into the MXU, f32 accumulate.
    xse = xse_ref[...].astype(w1_ref.dtype)
    h = jnp.dot(xse, w1_ref[...], preferred_element_type=jnp.float32)
    h = jnp.maximum(h + b1_ref[...], 0.0)                       # act1 = ReLU (f32)
    # Linear(expand): hidden back to weight dtype (bf16) for the MXU.
    z = jnp.dot(h.astype(w2_ref.dtype), w2_ref[...],
                preferred_element_type=jnp.float32) + b2_ref[...]
    # sigmoid(z) = 0.5 * tanh(0.5 z) + 0.5 : a single EUP push (tanh), the
    # mul/add run on the VPU; halves EUP pressure vs exp + reciprocal.
    g = 0.5 * jnp.tanh(0.5 * z) + 0.5
    # Lean epilogue: gate multiply in the I/O dtype, one lane-dense store.
    o_ref[...] = (x_ref[...] * g.astype(x_ref.dtype)).astype(o_ref.dtype)


def _choose_tm(M, C_pad, io_itemsize, weight_bytes, vmem_cap):
    """Largest row tile that fits the generation-appropriate VMEM budget."""
    # Per-row VMEM: 3 pipelined I/O tiles (x, x_se, out) double-buffered, plus
    # f32 intermediates (h, z, g) and the bf16 MXU operand copies in the body.
    bytes_per_row = 3 * 2 * C_pad * io_itemsize + C_pad * (3 * 4 + 2 * 2)
    if vmem_cap >= (96 << 20):            # v5e / v6e: 128 MiB physical VMEM
        budget, tm_cap = (64 << 20), 4096
    else:                                 # v7x: 64 MiB physical VMEM
        budget, tm_cap = (36 << 20), 2048
    tile_budget = max(budget - weight_bytes, 4 << 20)
    tm = min(tm_cap, max(_SUBLANE, tile_budget // bytes_per_row))
    tm = min(tm, _round_up(M, _SUBLANE))
    tm = max(_SUBLANE, (tm // _SUBLANE) * _SUBLANE)
    # Keep >= ~8 grid steps when there is enough work (pipeline depth, megacore).
    while tm > 512 and _cdiv(M, tm) < 8:
        tm //= 2
    tm = max(_SUBLANE, (tm // _SUBLANE) * _SUBLANE)
    # v7x megacore: prefer an even number of grid steps (2 TCs share the axis).
    s = _cdiv(M, tm)
    if s >= 3 and s % 2 == 1:
        tm2 = max(_SUBLANE, _round_up(_cdiv(M, s + 1), _SUBLANE))
        if _cdiv(M, tm2) % 2 == 0:
            tm = tm2
    return max(_SUBLANE, (tm // _SUBLANE) * _SUBLANE)


def se_layer_linear(x, x_se, w1, b1, w2, b2, *, tm=None):
    """SELayer_Linear forward.

    x, x_se : [B, N, C] (channels last).
    w1, w2  : torch-convention Linear weights, shape (out=C, in=C).
    b1, b2  : (C,).
    """
    B, N, C = x.shape
    M = B * N

    C_pad = _round_up(C, _LANE)
    io_dtype = x.dtype
    io_itemsize = jnp.dtype(io_dtype).itemsize

    # MXU operands in bf16 (f32xf32 runs as multi-pass bf16 at ~1/4 rate);
    # keep any already-narrow weight dtype as-is.
    if jnp.dtype(w1.dtype) in (jnp.dtype(jnp.float32), jnp.dtype(jnp.bfloat16)):
        mxu_dtype = jnp.bfloat16
    else:
        mxu_dtype = w1.dtype
    w_itemsize = jnp.dtype(mxu_dtype).itemsize

    # No row padding: Pallas masks the partial last row-block. Channel (K-dim)
    # padding must remain explicit zeros so padded lanes don't contaminate the
    # matmul reduction; only applied when C is not lane-aligned.
    x2 = x.reshape(M, C)
    xse2 = x_se.reshape(M, C)
    if C_pad != C:
        x2 = jnp.pad(x2, ((0, 0), (0, C_pad - C)))
        xse2 = jnp.pad(xse2, ((0, 0), (0, C_pad - C)))

    # Pre-transpose weights to (in, out) and pre-cast to the MXU dtype; zero-pad
    # so padded channels stay 0 through the ReLU branch.
    w1t = w1.T.astype(mxu_dtype)
    w2t = w2.T.astype(mxu_dtype)
    b1r = b1.astype(jnp.float32).reshape(1, C)
    b2r = b2.astype(jnp.float32).reshape(1, C)
    if C_pad != C:
        pad_c = ((0, C_pad - C), (0, C_pad - C))
        w1t = jnp.pad(w1t, pad_c)
        w2t = jnp.pad(w2t, pad_c)
        b1r = jnp.pad(b1r, ((0, 0), (0, C_pad - C)))
        b2r = jnp.pad(b2r, ((0, 0), (0, C_pad - C)))

    # Weights have a constant index_map; at large C a second buffer is waste.
    single_buf_weights = C_pad >= 768
    n_wbuf = 1 if single_buf_weights else 2
    weight_bytes = n_wbuf * (2 * C_pad * C_pad * w_itemsize + 2 * C_pad * 4)

    vmem_cap = _vmem_capacity_bytes()
    if tm is None:
        tm = _choose_tm(M, C_pad, io_itemsize, weight_bytes, vmem_cap)
    grid_m = _cdiv(M, tm)

    # VMEM accounting: pipelined I/O tiles + f32 intermediates + weights, with
    # headroom, clamped to the physical capacity of this generation.
    tile_bytes = 3 * 2 * tm * C_pad * io_itemsize
    interm_bytes = tm * C_pad * (3 * 4 + 2 * w_itemsize)
    need = tile_bytes + interm_bytes + weight_bytes
    vmem_limit = int(min(max(vmem_cap - (8 << 20), 32 << 20),
                         max(32 << 20, 1.25 * need)))

    if single_buf_weights:
        w_spec = pl.BlockSpec((C_pad, C_pad), lambda i: (0, 0),
                              pipeline_mode=pl.Buffered(1))
        b_spec = pl.BlockSpec((1, C_pad), lambda i: (0, 0),
                              pipeline_mode=pl.Buffered(1))
    else:
        w_spec = pl.BlockSpec((C_pad, C_pad), lambda i: (0, 0))
        b_spec = pl.BlockSpec((1, C_pad), lambda i: (0, 0))

    out = pl.pallas_call(
        _se_kernel,
        out_shape=jax.ShapeDtypeStruct((M, C_pad), io_dtype),
        grid_spec=pltpu.PrefetchScalarGridSpec(
            num_scalar_prefetch=0,
            grid=(grid_m,),
            in_specs=[
                pl.BlockSpec((tm, C_pad), lambda i: (i, 0)),   # x tile
                pl.BlockSpec((tm, C_pad), lambda i: (i, 0)),   # x_se tile
                w_spec,                                        # W1^T (resident)
                b_spec,                                        # b1
                w_spec,                                        # W2^T (resident)
                b_spec,                                        # b2
            ],
            out_specs=pl.BlockSpec((tm, C_pad), lambda i: (i, 0)),
        ),
        compiler_params=pltpu.CompilerParams(
            dimension_semantics=("parallel",),
            vmem_limit_bytes=vmem_limit,
        ),
    )(x2, xse2, w1t, b1r, w2t, b2r)

    if C_pad != C:
        out = out[:, :C]
    return out.reshape(B, N, C)


def se_layer_linear_ref(x, x_se, w1, b1, w2, b2):
    h = jnp.maximum(x_se @ w1.T + b1, 0.0)
    g = jax.nn.sigmoid(h @ w2.T + b2)
    return x * g


if __name__ == "__main__":
    key = jax.random.PRNGKey(0)
    kx, kxse, kw1, kb1, kw2, kb2 = jax.random.split(key, 6)

    # Lane-dense demo shape (C is a multiple of 128), f32 I/O.
    B, N, C = 2, 128, 128
    x = jax.random.normal(kx, (B, N, C), dtype=jnp.float32)
    x_se = jax.random.normal(kxse, (B, N, C), dtype=jnp.float32)
    bound = 1.0 / math.sqrt(C)
    w1 = jax.random.uniform(kw1, (C, C), minval=-bound, maxval=bound, dtype=jnp.float32)
    b1 = jax.random.uniform(kb1, (C,), minval=-bound, maxval=bound, dtype=jnp.float32)
    w2 = jax.random.uniform(kw2, (C, C), minval=-bound, maxval=bound, dtype=jnp.float32)
    b2 = jax.random.uniform(kb2, (C,), minval=-bound, maxval=bound, dtype=jnp.float32)

    out = jax.block_until_ready(se_layer_linear(x, x_se, w1, b1, w2, b2))
    ref = se_layer_linear_ref(x, x_se, w1, b1, w2, b2)
    assert out.shape == (B, N, C)
    # bf16 MXU operands with f32 accumulation: ~1e-3 absolute error expected.
    assert jnp.allclose(out, ref, atol=2e-2, rtol=2e-2), "f32 mismatch vs reference"

    # Awkward shape: exercises channel padding (96 -> 128) and a partial row block.
    B2, N2, C2 = 1, 50, 96
    x_b = jax.random.normal(kx, (B2, N2, C2), dtype=jnp.float32)
    xse_b = jax.random.normal(kxse, (B2, N2, C2), dtype=jnp.float32)
    bound2 = 1.0 / math.sqrt(C2)
    w1_b = jax.random.uniform(kw1, (C2, C2), minval=-bound2, maxval=bound2, dtype=jnp.float32)
    b1_b = jax.random.uniform(kb1, (C2,), minval=-bound2, maxval=bound2, dtype=jnp.float32)
    w2_b = jax.random.uniform(kw2, (C2, C2), minval=-bound2, maxval=bound2, dtype=jnp.float32)
    b2_b = jax.random.uniform(kb2, (C2,), minval=-bound2, maxval=bound2, dtype=jnp.float32)
    out_b = jax.block_until_ready(se_layer_linear(x_b, xse_b, w1_b, b1_b, w2_b, b2_b))
    ref_b = se_layer_linear_ref(x_b, xse_b, w1_b, b1_b, w2_b, b2_b)
    assert out_b.shape == (B2, N2, C2)
    assert jnp.allclose(out_b, ref_b, atol=2e-2, rtol=2e-2), "padded-shape mismatch"

    # bf16 end-to-end I/O path (bf16 MXU inputs, bf16 gate multiply / store).
    out_h = jax.block_until_ready(
        se_layer_linear(x.astype(jnp.bfloat16), x_se.astype(jnp.bfloat16),
                        w1.astype(jnp.bfloat16), b1,
                        w2.astype(jnp.bfloat16), b2))
    assert out_h.dtype == jnp.bfloat16
    assert jnp.allclose(out_h.astype(jnp.float32), ref, atol=1e-1, rtol=1e-1), \
        "bf16 mismatch vs reference"

    print("KERNEL_OK")
</pallas_src>

<mosaic_0001>
module attributes {stable_mosaic.version = 11 : i64} {
  func.func @_se_kernel(%arg0: i32, %arg1: memref<256x128xf32, #tpu.memory_space<vmem>>, %arg2: memref<256x128xf32, #tpu.memory_space<vmem>>, %arg3: memref<128x128xbf16, #tpu.memory_space<vmem>>, %arg4: memref<1x128xf32, #tpu.memory_space<vmem>>, %arg5: memref<128x128xbf16, #tpu.memory_space<vmem>>, %arg6: memref<1x128xf32, #tpu.memory_space<vmem>>, %arg7: memref<256x128xf32, #tpu.memory_space<vmem>>) attributes {dimension_semantics = [#tpu.dimension_semantics<parallel>], iteration_bounds = array<i64: 1>, scalar_prefetch = 0 : i64, scratch_operands = 0 : i64, tpu.core_type = #tpu.core_type<tc>, window_params = [{transform_indices = @transform_0, window_bounds = array<i64: 256, 128>}, {transform_indices = @transform_1, window_bounds = array<i64: 256, 128>}, {pipeline_mode = #tpu.pipeline_mode<synchronous>, transform_indices = @transform_2, window_bounds = array<i64: 128, 128>}, {pipeline_mode = #tpu.pipeline_mode<synchronous>, transform_indices = @transform_3, window_bounds = array<i64: 1, 128>}, {pipeline_mode = #tpu.pipeline_mode<synchronous>, transform_indices = @transform_4, window_bounds = array<i64: 128, 128>}, {pipeline_mode = #tpu.pipeline_mode<synchronous>, transform_indices = @transform_5, window_bounds = array<i64: 1, 128>}, {transform_indices = @transform_6, window_bounds = array<i64: 256, 128>}]} {
    %c0 = arith.constant 0 : index
    %c0_0 = arith.constant 0 : index
    %0 = vector.load %arg2[%c0, %c0_0] : memref<256x128xf32, #tpu.memory_space<vmem>>, vector<256x128xf32>
    %1 = arith.truncf %0 : vector<256x128xf32> to vector<256x128xbf16>
    %c0_1 = arith.constant 0 : index
    %c0_2 = arith.constant 0 : index
    %2 = vector.load %arg3[%c0_1, %c0_2] : memref<128x128xbf16, #tpu.memory_space<vmem>>, vector<128x128xbf16>
    %cst = arith.constant dense<0.000000e+00> : vector<256x128xf32>
    %3 = tpu.matmul %1, %2, %cst {dimension_numbers = #tpu.dot_dimension_numbers<[1], [0], [0], [1], [0, 0, 1, 1], [], []>} : vector<256x128xbf16>, vector<128x128xbf16>, vector<256x128xf32> -> vector<256x128xf32>
    %c0_3 = arith.constant 0 : index
    %c0_4 = arith.constant 0 : index
    %4 = vector.load %arg4[%c0_3, %c0_4] : memref<1x128xf32, #tpu.memory_space<vmem>>, vector<1x128xf32>
    %5 = vector.broadcast %4 : vector<1x128xf32> to vector<256x128xf32>
    %6 = arith.addf %3, %5 : vector<256x128xf32>
    %cst_5 = arith.constant 0.000000e+00 : f32
    %7 = vector.broadcast %cst_5 : f32 to vector<256x128xf32>
    %8 = arith.maximumf %6, %7 : vector<256x128xf32>
    %9 = arith.truncf %8 : vector<256x128xf32> to vector<256x128xbf16>
    %c0_6 = arith.constant 0 : index
    %c0_7 = arith.constant 0 : index
    %10 = vector.load %arg5[%c0_6, %c0_7] : memref<128x128xbf16, #tpu.memory_space<vmem>>, vector<128x128xbf16>
    %cst_8 = arith.constant dense<0.000000e+00> : vector<256x128xf32>
    %11 = tpu.matmul %9, %10, %cst_8 {dimension_numbers = #tpu.dot_dimension_numbers<[1], [0], [0], [1], [0, 0, 1, 1], [], []>} : vector<256x128xbf16>, vector<128x128xbf16>, vector<256x128xf32> -> vector<256x128xf32>
    %c0_9 = arith.constant 0 : index
    %c0_10 = arith.constant 0 : index
    %12 = vector.load %arg6[%c0_9, %c0_10] : memref<1x128xf32, #tpu.memory_space<vmem>>, vector<1x128xf32>
    %13 = vector.broadcast %12 : vector<1x128xf32> to vector<256x128xf32>
    %14 = arith.addf %11, %13 : vector<256x128xf32>
    %cst_11 = arith.constant 5.000000e-01 : f32
    %15 = vector.broadcast %cst_11 : f32 to vector<256x128xf32>
    %16 = arith.mulf %15, %14 : vector<256x128xf32>
    %17 = math.tanh %16 : vector<256x128xf32>
    %cst_12 = arith.constant 5.000000e-01 : f32
    %18 = vector.broadcast %cst_12 : f32 to vector<256x128xf32>
    %19 = arith.mulf %18, %17 : vector<256x128xf32>
    %cst_13 = arith.constant 5.000000e-01 : f32
    %20 = vector.broadcast %cst_13 : f32 to vector<256x128xf32>
    %21 = arith.addf %19, %20 : vector<256x128xf32>
    %c0_14 = arith.constant 0 : index
    %c0_15 = arith.constant 0 : index
    %22 = vector.load %arg1[%c0_14, %c0_15] : memref<256x128xf32, #tpu.memory_space<vmem>>, vector<256x128xf32>
    %23 = arith.mulf %22, %21 : vector<256x128xf32>
    %c0_16 = arith.constant 0 : index
    %c0_17 = arith.constant 0 : index
    %24 = vector.load %arg7[%c0_16, %c0_17] : memref<256x128xf32, #tpu.memory_space<vmem>>, vector<256x128xf32>
    tpu.vector_store %arg7[%c0_16, %c0_17], %23 {strides = array<i32>} : memref<256x128xf32, #tpu.memory_space<vmem>>, vector<256x128xf32>,
    return
  }
  func.func @transform_0(%arg0: i32) -> (i32, i32) {
    %c0_i32 = arith.constant 0 : i32
    %c0_i32_0 = arith.constant 0 : i32
    return %arg0, %c0_i32 : i32, i32
  }
  func.func @transform_1(%arg0: i32) -> (i32, i32) {
    %c0_i32 = arith.constant 0 : i32
    %c0_i32_0 = arith.constant 0 : i32
    return %arg0, %c0_i32 : i32, i32
  }
  func.func @transform_2(%arg0: i32) -> (i32, i32) {
    %c0_i32 = arith.constant 0 : i32
    %c0_i32_0 = arith.constant 0 : i32
    %c0_i32_1 = arith.constant 0 : i32
    return %c0_i32, %c0_i32_0 : i32, i32
  }
  func.func @transform_3(%arg0: i32) -> (i32, i32) {
    %c0_i32 = arith.constant 0 : i32
    %c0_i32_0 = arith.constant 0 : i32
    %c0_i32_1 = arith.constant 0 : i32
    return %c0_i32, %c0_i32_0 : i32, i32
  }
  func.func @transform_4(%arg0: i32) -> (i32, i32) {
    %c0_i32 = arith.constant 0 : i32
    %c0_i32_0 = arith.constant 0 : i32
    %c0_i32_1 = arith.constant 0 : i32
    return %c0_i32, %c0_i32_0 : i32, i32
  }
  func.func @transform_5(%arg0: i32) -> (i32, i32) {
    %c0_i32 = arith.constant 0 : i32
    %c0_i32_0 = arith.constant 0 : i32
    %c0_i32_1 = arith.constant 0 : i32
    return %c0_i32, %c0_i32_0 : i32, i32
  }
  func.func @transform_6(%arg0: i32) -> (i32, i32) {
    %c0_i32 = arith.constant 0 : i32
    %c0_i32_0 = arith.constant 0 : i32
    return %arg0, %c0_i32 : i32, i32
  }
}

</mosaic_0001>

<llo_original>
// kernel: tpu_custom_call.1
$region0: #{tpu_custom_call.1}
  #allocation0 [shape = 'u32[]', space=smem, size = 0x4, offset = 0x4, fixed_abs, tag = 'smem constant byte address 0x4 - core index']
  #allocation1 [shape = 'u32[144,128]{1,0:T(1,128)}', space=vmem, size = 0x12000, scoped, tag = 'internal scratch']
  %s0 = inlined_call_operand.hbm [shape: f32[256,128], index: 0, kind: input, shape index: {}]
  %s1 = inlined_call_operand.hbm [shape: f32[256,128], index: 1, kind: input, shape index: {}]
  %s2 = inlined_call_operand.hbm [shape: bf16[128,128], index: 2, kind: input, shape index: {}]
  %s3 = inlined_call_operand.vmem [shape: f32[1,128], index: 3, kind: input, shape index: {}]
  %s4 = inlined_call_operand.hbm [shape: bf16[128,128], index: 4, kind: input, shape index: {}]
  %s5 = inlined_call_operand.vmem [shape: f32[1,128], index: 5, kind: input, shape index: {}]
  %s6 = inlined_call_operand.hbm [shape: f32[256,128], index: 6, kind: output, shape index: {}]
  %s7 = sld [smem:[#allocation0]]
  $region50: #{tpu_custom_call.1} parent=0
    _
  %s9 = ssub.s32 1, %s7
  %s10 = scalar_select 0, %s9, %s7
  $region1: #{tpu_custom_call.1} parent=0
    #allocation2 [shape = 'u8[131072]{0}', space=vmem, size = 0x20000, scoped, tag = 'input window, operand 0, single buffered']
    #allocation3 [shape = 's32[1]{0}', space=sflag, size = 0x4, scoped, tag = 'scoped memory for tpu_custom_call.1']
    #allocation4 [shape = 's32[1]{0}', space=sflag, size = 0x4, scoped, tag = 'scoped memory for tpu_custom_call.1']
    #allocation5 [shape = 'u8[131072]{0}', space=vmem, size = 0x20000, scoped, tag = 'input window, operand 1, single buffered']
    #allocation6 [shape = 's32[1]{0}', space=sflag, size = 0x4, scoped, tag = 'scoped memory for tpu_custom_call.1']
    #allocation7 [shape = 'u8[32768]{0}', space=vmem, size = 0x8000, scoped, tag = 'input window, operand 2, single buffered']
    #allocation8 [shape = 'u8[32768]{0}', space=vmem, size = 0x8000, scoped, tag = 'input window, operand 4, single buffered']
    #allocation9 [shape = 's32[1]{0}', space=sflag, size = 0x4, scoped, tag = 'scoped memory for tpu_custom_call.1']
    #allocation10 [shape = 'u8[131072]{0}', space=vmem, size = 0x20000, scoped, tag = 'output window, operand 0, single buffered']
    %11 = vsyncpa [#allocation3], 0
    %12 = vsyncpa [#allocation6], 0
    %13 = vsyncpa [#allocation9], 0
    %14 = vsyncpa [#allocation4], 0
    // Predicated region
    $region2: #{tpu_custom_call.1} parent=1 // pred_check
      _
    $region3: #{tpu_custom_call.1} parent=1 // pred_check_branch
      %16 = sbr.rel (0) target = $region5
    $region4: #{tpu_custom_call.1} parent=1 // pred_region
      %s18 = ssub.s32 4096, 4096
      %19 = vsyncadd [#allocation3], %s18
      %s20 = sshll.u32 [#allocation2], 4
      %s21 = int_to_ptr.vmem [resolvable:$true] %s20
      %26 = dma.hbm_to_vmem [thread:$0]  %s0, 4096, %s21, [#allocation3], 128, 128, 8
    $region5: #{tpu_custom_call.1} parent=1 // pred_fallthru
      _
    // Predicated region
    $region6: #{tpu_custom_call.1} parent=1 // pred_check
      _
    $region7: #{tpu_custom_call.1} parent=1 // pred_check_branch
      %28 = sbr.rel (0) target = $region9
    $region8: #{tpu_custom_call.1} parent=1 // pred_region
      %s30 = ssub.s32 4096, 4096
      %31 = vsyncadd [#allocation6], %s30
      %s32 = sshll.u32 [#allocation5], 4
      %s33 = int_to_ptr.vmem [resolvable:$true] %s32
      %38 = dma.hbm_to_vmem [thread:$0]  %s1, 4096, %s33, [#allocation6], 128, 128, 8
    $region9: #{tpu_custom_call.1} parent=1 // pred_fallthru
      _
    // Predicated region
    $region10: #{tpu_custom_call.1} parent=1 // pred_check
      _
    $region11: #{tpu_custom_call.1} parent=1 // pred_check_branch
      %40 = sbr.rel (0) target = $region13
    $region12: #{tpu_custom_call.1} parent=1 // pred_region
      %s42 = ssub.s32 1024, 1024
      %43 = vsyncadd [#allocation6], %s42
      %s44 = sshll.u32 [#allocation7], 4
      %s45 = int_to_ptr.vmem [resolvable:$true] %s44
      %50 = dma.hbm_to_vmem [thread:$0]  %s2, 1024, %s45, [#allocation6], 64, 64, 4
    $region13: #{tpu_custom_call.1} parent=1 // pred_fallthru
      _
    // Predicated region
    $region14: #{tpu_custom_call.1} parent=1 // pred_check
      _
    $region15: #{tpu_custom_call.1} parent=1 // pred_check_branch
      %52 = sbr.rel (0) target = $region17
    $region16: #{tpu_custom_call.1} parent=1 // pred_region
      _
    $region17: #{tpu_custom_call.1} parent=1 // pred_fallthru
      _
    // Predicated region
    $region18: #{tpu_custom_call.1} parent=1 // pred_check
      _
    $region19: #{tpu_custom_call.1} parent=1 // pred_check_branch
      %54 = sbr.rel (0) target = $region21
    $region20: #{tpu_custom_call.1} parent=1 // pred_region
      %s56 = ssub.s32 1024, 1024
      %57 = vsyncadd [#allocation9], %s56
      %s58 = sshll.u32 [#allocation8], 4
      %s59 = int_to_ptr.vmem [resolvable:$true] %s58
      %64 = dma.hbm_to_vmem [thread:$0]  %s4, 1024, %s59, [#allocation9], 64, 64, 4
    $region21: #{tpu_custom_call.1} parent=1 // pred_fallthru
      _
    // Predicated region
    $region22: #{tpu_custom_call.1} parent=1 // pred_check
      _
    $region23: #{tpu_custom_call.1} parent=1 // pred_check_branch
      %66 = sbr.rel (0) target = $region25
    $region24: #{tpu_custom_call.1} parent=1 // pred_region
      _
    $region25: #{tpu_custom_call.1} parent=1 // pred_fallthru
      _
    // Predicated region
    $region26: #{tpu_custom_call.1} parent=1 // pred_check
      _
    $region27: #{tpu_custom_call.1} parent=1 // pred_check_branch
      %68 = sbr.rel (0) target = $region29
    $region28: #{tpu_custom_call.1} parent=1 // pred_region
      %69 = dma.done [#allocation3], 4096
    $region29: #{tpu_custom_call.1} parent=1 // pred_fallthru
      _
    // Predicated region
    $region30: #{tpu_custom_call.1} parent=1 // pred_check
      _
    $region31: #{tpu_custom_call.1} parent=1 // pred_check_branch
      %71 = sbr.rel (0) target = $region33
    $region32: #{tpu_custom_call.1} parent=1 // pred_region
      %72 = dma.done [#allocation6], 4096
    $region33: #{tpu_custom_call.1} parent=1 // pred_fallthru
      _
    // Predicated region
    $region34: #{tpu_custom_call.1} parent=1 // pred_check
      _
    $region35: #{tpu_custom_call.1} parent=1 // pred_check_branch
      %74 = sbr.rel (0) target = $region37
    $region36: #{tpu_custom_call.1} parent=1 // pred_region
      %75 = dma.done [#allocation6], 1024
    $region37: #{tpu_custom_call.1} parent=1 // pred_fallthru
      _
    // Predicated region
    $region38: #{tpu_custom_call.1} parent=1 // pred_check
      _
    $region39: #{tpu_custom_call.1} parent=1 // pred_check_branch
      %77 = sbr.rel (0) target = $region41
    $region40: #{tpu_custom_call.1} parent=1 // pred_region
      %78 = dma.done [#allocation9], 1024
    $region41: #{tpu_custom_call.1} parent=1 // pred_fallthru
      _
    %v80 = vld [vmem:[#allocation5] sm:$0xff]
    %v81 = vld [vmem:[#allocation5 + $0x8] sm:$0xff]
    %v82 = vld [vmem:[#allocation5 + $0x10] sm:$0xff]
    %v83 = vld [vmem:[#allocation5 + $0x18] sm:$0xff]
    %v84 = vld [vmem:[#allocation5 + $0x20] sm:$0xff]
    %v85 = vld [vmem:[#allocation5 + $0x28] sm:$0xff]
    %v86 = vld [vmem:[#allocation5 + $0x30] sm:$0xff]
    %v87 = vld [vmem:[#allocation5 + $0x38] sm:$0xff]
    %v88 = vld [vmem:[#allocation5 + $0x40] sm:$0xff]
    %v89 = vld [vmem:[#allocation5 + $0x48] sm:$0xff]
    %v90 = vld [vmem:[#allocation5 + $0x50] sm:$0xff]
    %v91 = vld [vmem:[#allocation5 + $0x58] sm:$0xff]
    %v92 = vld [vmem:[#allocation5 + $0x60] sm:$0xff]
    %v93 = vld [vmem:[#allocation5 + $0x68] sm:$0xff]
    %v94 = vld [vmem:[#allocation5 + $0x70] sm:$0xff]
    %v95 = vld [vmem:[#allocation5 + $0x78] sm:$0xff]
    %v96 = vld [vmem:[#allocation5 + $0x80] sm:$0xff]
    %v97 = vld [vmem:[#allocation5 + $0x88] sm:$0xff]
    %v98 = vld [vmem:[#allocation5 + $0x90] sm:$0xff]
    %v99 = vld [vmem:[#allocation5 + $0x98] sm:$0xff]
    %v100 = vld [vmem:[#allocation5 + $0xa0] sm:$0xff]
    %v101 = vld [vmem:[#allocation5 + $0xa8] sm:$0xff]
    %v102 = vld [vmem:[#allocation5 + $0xb0] sm:$0xff]
    %v103 = vld [vmem:[#allocation5 + $0xb8] sm:$0xff]
    %v104 = vld [vmem:[#allocation5 + $0xc0] sm:$0xff]
    %v105 = vld [vmem:[#allocation5 + $0xc8] sm:$0xff]
    %v106 = vld [vmem:[#allocation5 + $0xd0] sm:$0xff]
    %v107 = vld [vmem:[#allocation5 + $0xd8] sm:$0xff]
    %v108 = vld [vmem:[#allocation5 + $0xe0] sm:$0xff]
    %v109 = vld [vmem:[#allocation5 + $0xe8] sm:$0xff]
    %v110 = vld [vmem:[#allocation5 + $0xf0] sm:$0xff]
    %v111 = vld [vmem:[#allocation5 + $0xf8] sm:$0xff]
    %v112 = vpack.c.bf16 %v81, %v80
    %v113 = vpack.c.bf16 %v83, %v82
    %v114 = vpack.c.bf16 %v85, %v84
    %v115 = vpack.c.bf16 %v87, %v86
    %v116 = vpack.c.bf16 %v89, %v88
    %v117 = vpack.c.bf16 %v91, %v90
    %v118 = vpack.c.bf16 %v93, %v92
    %v119 = vpack.c.bf16 %v95, %v94
    %v120 = vpack.c.bf16 %v97, %v96
    %v121 = vpack.c.bf16 %v99, %v98
    %v122 = vpack.c.bf16 %v101, %v100
    %v123 = vpack.c.bf16 %v103, %v102
    %v124 = vpack.c.bf16 %v105, %v104
    %v125 = vpack.c.bf16 %v107, %v106
    %v126 = vpack.c.bf16 %v109, %v108
    %v127 = vpack.c.bf16 %v111, %v110
    %v128 = vld [vmem:[#allocation7] sm:$0xf]
    %v129 = vld [vmem:[#allocation7 + $0x4] sm:$0xf]
    %v130 = vld [vmem:[#allocation7 + $0x8] sm:$0xf]
    %v131 = vld [vmem:[#allocation7 + $0xc] sm:$0xf]
    %v132 = vld [vmem:[#allocation7 + $0x10] sm:$0xf]
    %v133 = vld [vmem:[#allocation7 + $0x14] sm:$0xf]
    %v134 = vld [vmem:[#allocation7 + $0x18] sm:$0xf]
    %v135 = vld [vmem:[#allocation7 + $0x1c] sm:$0xf]
    %v136 = vld [vmem:[#allocation7 + $0x20] sm:$0xf]
    %v137 = vld [vmem:[#allocation7 + $0x24] sm:$0xf]
    %v138 = vld [vmem:[#allocation7 + $0x28] sm:$0xf]
    %v139 = vld [vmem:[#allocation7 + $0x2c] sm:$0xf]
    %v140 = vld [vmem:[#allocation7 + $0x30] sm:$0xf]
    %v141 = vld [vmem:[#allocation7 + $0x34] sm:$0xf]
    %v142 = vld [vmem:[#allocation7 + $0x38] sm:$0xf]
    %v143 = vld [vmem:[#allocation7 + $0x3c] sm:$0xf]
    %v144 = vld [vmem:[%s3] sm:$0x1]
    %v146 = vlaneseq
    %v147 = vshrl.u32 %v146, 7
    %v148 = vsub.s32 0, %v147
    %v149 = vrot.slane %v144, %v148
    %v167 = vunpack.c.l.b16 %v128
    %v168 = vunpack.c.l.b16 %v129
    %v169 = vunpack.c.l.b16 %v130
    %v170 = vunpack.c.l.b16 %v131
    %v171 = vunpack.c.l.b16 %v132
    %v172 = vunpack.c.l.b16 %v133
    %v173 = vunpack.c.l.b16 %v134
    %v174 = vunpack.c.l.b16 %v135
    %v175 = vunpack.c.l.b16 %v136
    %v176 = vunpack.c.l.b16 %v137
    %v177 = vunpack.c.l.b16 %v138
    %v178 = vunpack.c.l.b16 %v139
    %v179 = vunpack.c.l.b16 %v140
    %v180 = vunpack.c.l.b16 %v141
    %v181 = vunpack.c.l.b16 %v142
    %v182 = vunpack.c.l.b16 %v143
    %v183 = vpack.c.b16 %v168, %v167
    %v184 = vpack.c.b16 %v170, %v169
    %v185 = vpack.c.b16 %v172, %v171
    %v186 = vpack.c.b16 %v174, %v173
    %v187 = vpack.c.b16 %v176, %v175
    %v188 = vpack.c.b16 %v178, %v177
    %v189 = vpack.c.b16 %v180, %v179
    %v190 = vpack.c.b16 %v182, %v181
    %199 = vmatprep.subr.bf16.mxu0 0
    %200 = vmatpush1.bf16.msra.mxu0 %v183
    %201 = vmatprep.subr.bf16.mxu0 0
    %202 = vmatpush1.bf16.msra.mxu0 %v184
    %203 = vmatprep.subr.bf16.mxu0 0
    %204 = vmatpush1.bf16.msra.mxu0 %v185
    %205 = vmatprep.subr.bf16.mxu0 0
    %206 = vmatpush1.bf16.msra.mxu0 %v186
    %207 = vmatprep.subr.bf16.mxu0 0
    %208 = vmatpush1.bf16.msra.mxu0 %v187
    %209 = vmatprep.subr.bf16.mxu0 0
    %210 = vmatpush1.bf16.msra.mxu0 %v188
    %211 = vmatprep.subr.bf16.mxu0 0
    %212 = vmatpush1.bf16.msra.mxu0 %v189
    %213 = vmatprep.subr.bf16.mxu0 0
    %214 = vmatpush1.bf16.msra.mxu0 %v190
    %215 = vmatprep.subr.bf16.mxu0 0
    %216 = vmatpush1.bf16.msra.mxu0 0
    %217 = vmatprep.subr.bf16.mxu0 0
    %218 = vmatpush1.bf16.msra.mxu0 0
    %219 = vmatprep.subr.bf16.mxu0 0
    %220 = vmatpush1.bf16.msra.mxu0 0
    %221 = vmatprep.subr.bf16.mxu0 0
    %222 = vmatpush1.bf16.msra.mxu0 0
    %223 = vmatprep.subr.bf16.mxu0 0
    %224 = vmatpush1.bf16.msra.mxu0 0
    %225 = vmatprep.subr.bf16.mxu0 0
    %226 = vmatpush1.bf16.msra.mxu0 0
    %227 = vmatprep.subr.bf16.mxu0 0
    %228 = vmatpush1.bf16.msra.mxu0 0
    %229 = vmatprep.subr.bf16.mxu0 0
    %230 = vmatpush1.bf16.msra.mxu0 0
    %231 = vmatprep.mubr.bf16.mxu0 0
    %232 = vmatmul.mubr.bf16.gmra.mrb[0].mxu0 %v112
    %v233 = vpop.f32.mrb[0].mxu0
    %v234 = vadd.f32 %v149, %v233
    %v235 = vpop.f32.mrb[0].mxu0
    %v236 = vpop.f32.mrb[0].mxu0
    %v237 = vadd.f32 %v149, %v236
    %v238 = vpop.f32.mrb[0].mxu0
    %239 = vmatprep.mubr.bf16.mxu0 0
    %240 = vmatmul.mubr.bf16.gmra.mrb[0].mxu0 %v113
    %v241 = vpop.f32.mrb[0].mxu0
    %v242 = vadd.f32 %v149, %v241
    %v243 = vpop.f32.mrb[0].mxu0
    %v244 = vpop.f32.mrb[0].mxu0
    %v245 = vadd.f32 %v149, %v244
    %v246 = vpop.f32.mrb[0].mxu0
    %247 = vmatprep.mubr.bf16.mxu0 0
    %248 = vmatmul.mubr.bf16.gmra.mrb[0].mxu0 %v114
    %v249 = vpop.f32.mrb[0].mxu0
    %v250 = vadd.f32 %v149, %v249
    %v251 = vpop.f32.mrb[0].mxu0
    %v252 = vpop.f32.mrb[0].mxu0
    %v253 = vadd.f32 %v149, %v252
    %v254 = vpop.f32.mrb[0].mxu0
    %255 = vmatprep.mubr.bf16.mxu0 0
    %256 = vmatmul.mubr.bf16.gmra.mrb[0].mxu0 %v115
    %v257 = vpop.f32.mrb[0].mxu0
    %v258 = vadd.f32 %v149, %v257
    %v259 = vpop.f32.mrb[0].mxu0
    %v260 = vpop.f32.mrb[0].mxu0
    %v261 = vadd.f32 %v149, %v260
    %v262 = vpop.f32.mrb[0].mxu0
    %263 = vmatprep.mubr.bf16.mxu0 0
    %264 = vmatmul.mubr.bf16.gmra.mrb[0].mxu0 %v116
    %v265 = vpop.f32.mrb[0].mxu0
    %v266 = vadd.f32 %v149, %v265
    %v267 = vpop.f32.mrb[0].mxu0
    %v268 = vpop.f32.mrb[0].mxu0
    %v269 = vadd.f32 %v149, %v268
    %v270 = vpop.f32.mrb[0].mxu0
    %271 = vmatprep.mubr.bf16.mxu0 0
    %272 = vmatmul.mubr.bf16.gmra.mrb[0].mxu0 %v117
    %v273 = vpop.f32.mrb[0].mxu0
    %v274 = vadd.f32 %v149, %v273
    %v275 = vpop.f32.mrb[0].mxu0
    %v276 = vpop.f32.mrb[0].mxu0
    %v277 = vadd.f32 %v149, %v276
    %v278 = vpop.f32.mrb[0].mxu0
    %279 = vmatprep.mubr.bf16.mxu0 0
    %280 = vmatmul.mubr.bf16.gmra.mrb[0].mxu0 %v118
    %v281 = vpop.f32.mrb[0].mxu0
    %v282 = vadd.f32 %v149, %v281
    %v283 = vpop.f32.mrb[0].mxu0
    %v284 = vpop.f32.mrb[0].mxu0
    %v285 = vadd.f32 %v149, %v284
    %v286 = vpop.f32.mrb[0].mxu0
    %287 = vmatprep.mubr.bf16.mxu0 0
    %288 = vmatmul.mubr.bf16.gmra.mrb[0].mxu0 %v119
    %v289 = vpop.f32.mrb[0].mxu0
    %v290 = vadd.f32 %v149, %v289
    %v291 = vpop.f32.mrb[0].mxu0
    %v292 = vpop.f32.mrb[0].mxu0
    %v293 = vadd.f32 %v149, %v292
    %v294 = vpop.f32.mrb[0].mxu0
    %295 = vmatprep.mubr.bf16.mxu0 0
    %296 = vmatmul.mubr.bf16.gmra.mrb[0].mxu0 %v120
    %v297 = vpop.f32.mrb[0].mxu0
    %v298 = vadd.f32 %v149, %v297
    %v299 = vpop.f32.mrb[0].mxu0
    %v300 = vpop.f32.mrb[0].mxu0
    %v301 = vadd.f32 %v149, %v300
    %v302 = vpop.f32.mrb[0].mxu0
    %303 = vmatprep.mubr.bf16.mxu0 0
    %304 = vmatmul.mubr.bf16.gmra.mrb[0].mxu0 %v121
    %v305 = vpop.f32.mrb[0].mxu0
    %v306 = vadd.f32 %v149, %v305
    %v307 = vpop.f32.mrb[0].mxu0
    %v308 = vpop.f32.mrb[0].mxu0
    %v309 = vadd.f32 %v149, %v308
    %v310 = vpop.f32.mrb[0].mxu0
    %311 = vmatprep.mubr.bf16.mxu0 0
    %312 = vmatmul.mubr.bf16.gmra.mrb[0].mxu0 %v122
    %v313 = vpop.f32.mrb[0].mxu0
    %v314 = vadd.f32 %v149, %v313
    %v315 = vpop.f32.mrb[0].mxu0
    %v316 = vpop.f32.mrb[0].mxu0
    %v317 = vadd.f32 %v149, %v316
    %v318 = vpop.f32.mrb[0].mxu0
    %319 = vmatprep.mubr.bf16.mxu0 0
    %320 = vmatmul.mubr.bf16.gmra.mrb[0].mxu0 %v123
    %v321 = vpop.f32.mrb[0].mxu0
    %v322 = vadd.f32 %v149, %v321
    %v323 = vpop.f32.mrb[0].mxu0
    %v324 = vpop.f32.mrb[0].mxu0
    %v325 = vadd.f32 %v149, %v324
    %v326 = vpop.f32.mrb[0].mxu0
    %327 = vmatprep.mubr.bf16.mxu0 0
    %328 = vmatmul.mubr.bf16.gmra.mrb[0].mxu0 %v124
    %v329 = vpop.f32.mrb[0].mxu0
    %v330 = vadd.f32 %v149, %v329
    %v331 = vpop.f32.mrb[0].mxu0
    %v332 = vpop.f32.mrb[0].mxu0
    %v333 = vadd.f32 %v149, %v332
    %v334 = vpop.f32.mrb[0].mxu0
    %335 = vmatprep.mubr.bf16.mxu0 0
    %336 = vmatmul.mubr.bf16.gmra.mrb[0].mxu0 %v125
    %v337 = vpop.f32.mrb[0].mxu0
    %v338 = vadd.f32 %v149, %v337
    %v339 = vpop.f32.mrb[0].mxu0
    %v340 = vpop.f32.mrb[0].mxu0
    %v341 = vadd.f32 %v149, %v340
    %v342 = vpop.f32.mrb[0].mxu0
    %343 = vmatprep.mubr.bf16.mxu0 0
    %344 = vmatmul.mubr.bf16.gmra.mrb[0].mxu0 %v126
    %v345 = vpop.f32.mrb[0].mxu0
    %v346 = vadd.f32 %v149, %v345
    %v347 = vpop.f32.mrb[0].mxu0
    %v348 = vpop.f32.mrb[0].mxu0
    %v349 = vadd.f32 %v149, %v348
    %v350 = vpop.f32.mrb[0].mxu0
    %351 = vmatprep.mubr.bf16.mxu0 0
    %352 = vmatmul.mubr.bf16.gmra.mrb[0].mxu0 %v127
    %v353 = vpop.f32.mrb[0].mxu0
    %v354 = vadd.f32 %v149, %v353
    %v355 = vpop.f32.mrb[0].mxu0
    %v356 = vpop.f32.mrb[0].mxu0
    %v357 = vadd.f32 %v149, %v356
    %v358 = vpop.f32.mrb[0].mxu0
    %359 = vdwg.mxu0
    %v360 = vmax.f32 %v234, 0.0
    %v361 = vmax.f32 %v237, 0.0
    %v362 = vmax.f32 %v242, 0.0
    %v363 = vmax.f32 %v245, 0.0
    %v364 = vmax.f32 %v250, 0.0
    %v365 = vmax.f32 %v253, 0.0
    %v366 = vmax.f32 %v258, 0.0
    %v367 = vmax.f32 %v261, 0.0
    %v368 = vmax.f32 %v266, 0.0
    %v369 = vmax.f32 %v269, 0.0
    %v370 = vmax.f32 %v274, 0.0
    %v371 = vmax.f32 %v277, 0.0
    %v372 = vmax.f32 %v282, 0.0
    %v373 = vmax.f32 %v285, 0.0
    %v374 = vmax.f32 %v290, 0.0
    %v375 = vmax.f32 %v293, 0.0
    %v376 = vmax.f32 %v298, 0.0
    %v377 = vmax.f32 %v301, 0.0
    %v378 = vmax.f32 %v306, 0.0
    %v379 = vmax.f32 %v309, 0.0
    %v380 = vmax.f32 %v314, 0.0
    %v381 = vmax.f32 %v317, 0.0
    %v382 = vmax.f32 %v322, 0.0
    %v383 = vmax.f32 %v325, 0.0
    %v384 = vmax.f32 %v330, 0.0
    %v385 = vmax.f32 %v333, 0.0
    %v386 = vmax.f32 %v338, 0.0
    %v387 = vmax.f32 %v341, 0.0
    %v388 = vmax.f32 %v346, 0.0
    %v389 = vmax.f32 %v349, 0.0
    %v390 = vmax.f32 %v354, 0.0
    %v391 = vmax.f32 %v357, 0.0
    %v392 = vpack.c.bf16 %v361, %v360
    %v393 = vpack.c.bf16 %v363, %v362
    %v394 = vpack.c.bf16 %v365, %v364
    %v395 = vpack.c.bf16 %v367, %v366
    %v396 = vpack.c.bf16 %v369, %v368
    %v397 = vpack.c.bf16 %v371, %v370
    %v398 = vpack.c.bf16 %v373, %v372
    %v399 = vpack.c.bf16 %v375, %v374
    %v400 = vpack.c.bf16 %v377, %v376
    %v401 = vpack.c.bf16 %v379, %v378
    %v402 = vpack.c.bf16 %v381, %v380
    %v403 = vpack.c.bf16 %v383, %v382
    %v404 = vpack.c.bf16 %v385, %v384
    %v405 = vpack.c.bf16 %v387, %v386
    %v406 = vpack.c.bf16 %v389, %v388
    %v407 = vpack.c.bf16 %v391, %v390
    %v408 = vld [vmem:[#allocation8] sm:$0xf]
    %v409 = vld [vmem:[#allocation8 + $0x4] sm:$0xf]
    %v410 = vld [vmem:[#allocation8 + $0x8] sm:$0xf]
    %v411 = vld [vmem:[#allocation8 + $0xc] sm:$0xf]
    %v412 = vld [vmem:[#allocation8 + $0x10] sm:$0xf]
    %v413 = vld [vmem:[#allocation8 + $0x14] sm:$0xf]
    %v414 = vld [vmem:[#allocation8 + $0x18] sm:$0xf]
    %v415 = vld [vmem:[#allocation8 + $0x1c] sm:$0xf]
    %v416 = vld [vmem:[#allocation8 + $0x20] sm:$0xf]
    %v417 = vld [vmem:[#allocation8 + $0x24] sm:$0xf]
    %v418 = vld [vmem:[#allocation8 + $0x28] sm:$0xf]
    %v419 = vld [vmem:[#allocation8 + $0x2c] sm:$0xf]
    %v420 = vld [vmem:[#allocation8 + $0x30] sm:$0xf]
    %v421 = vld [vmem:[#allocation8 + $0x34] sm:$0xf]
    %v422 = vld [vmem:[#allocation8 + $0x38] sm:$0xf]
    %v423 = vld [vmem:[#allocation8 + $0x3c] sm:$0xf]
    %v424 = vld [vmem:[%s5] sm:$0x1]
    %v426 = vlaneseq
    %v427 = vshrl.u32 %v426, 7
    %v428 = vsub.s32 0, %v427
    %v429 = vrot.slane %v424, %v428
    %v447 = vunpack.c.l.b16 %v408
    %v448 = vunpack.c.l.b16 %v409
    %v449 = vunpack.c.l.b16 %v410
    %v450 = vunpack.c.l.b16 %v411
    %v451 = vunpack.c.l.b16 %v412
    %v452 = vunpack.c.l.b16 %v413
    %v453 = vunpack.c.l.b16 %v414
    %v454 = vunpack.c.l.b16 %v415
    %v455 = vunpack.c.l.b16 %v416
    %v456 = vunpack.c.l.b16 %v417
    %v457 = vunpack.c.l.b16 %v418
    %v458 = vunpack.c.l.b16 %v419
    %v459 = vunpack.c.l.b16 %v420
    %v460 = vunpack.c.l.b16 %v421
    %v461 = vunpack.c.l.b16 %v422
    %v462 = vunpack.c.l.b16 %v423
    %v463 = vpack.c.b16 %v448, %v447
    %v464 = vpack.c.b16 %v450, %v449
    %v465 = vpack.c.b16 %v452, %v451
    %v466 = vpack.c.b16 %v454, %v453
    %v467 = vpack.c.b16 %v456, %v455
    %v468 = vpack.c.b16 %v458, %v457
    %v469 = vpack.c.b16 %v460, %v459
    %v470 = vpack.c.b16 %v462, %v461
    %479 = vmatprep.subr.bf16.mxu0 0
    %480 = vmatpush1.bf16.msra.mxu0 %v463
    %481 = vmatprep.subr.bf16.mxu0 0
    %482 = vmatpush1.bf16.msra.mxu0 %v464
    %483 = vmatprep.subr.bf16.mxu0 0
    %484 = vmatpush1.bf16.msra.mxu0 %v465
    %485 = vmatprep.subr.bf16.mxu0 0
    %486 = vmatpush1.bf16.msra.mxu0 %v466
    %487 = vmatprep.subr.bf16.mxu0 0
    %488 = vmatpush1.bf16.msra.mxu0 %v467
    %489 = vmatprep.subr.bf16.mxu0 0
    %490 = vmatpush1.bf16.msra.mxu0 %v468
    %491 = vmatprep.subr.bf16.mxu0 0
    %492 = vmatpush1.bf16.msra.mxu0 %v469
    %493 = vmatprep.subr.bf16.mxu0 0
    %494 = vmatpush1.bf16.msra.mxu0 %v470
    %495 = vmatprep.subr.bf16.mxu0 0
    %496 = vmatpush1.bf16.msra.mxu0 0
    %497 = vmatprep.subr.bf16.mxu0 0
    %498 = vmatpush1.bf16.msra.mxu0 0
    %499 = vmatprep.subr.bf16.mxu0 0
    %500 = vmatpush1.bf16.msra.mxu0 0
    %501 = vmatprep.subr.bf16.mxu0 0
    %502 = vmatpush1.bf16.msra.mxu0 0
    %503 = vmatprep.subr.bf16.mxu0 0
    %504 = vmatpush1.bf16.msra.mxu0 0
    %505 = vmatprep.subr.bf16.mxu0 0
    %506 = vmatpush1.bf16.msra.mxu0 0
    %507 = vmatprep.subr.bf16.mxu0 0
    %508 = vmatpush1.bf16.msra.mxu0 0
    %509 = vmatprep.subr.bf16.mxu0 0
    %510 = vmatpush1.bf16.msra.mxu0 0
    %511 = vmatprep.mubr.bf16.mxu0 0
    %512 = vmatmul.mubr.bf16.gmra.mrb[0].mxu0 %v392
    %v513 = vpop.f32.mrb[0].mxu0
    %v514 = vadd.f32 %v429, %v513
    %v515 = vpop.f32.mrb[0].mxu0
    %v516 = vpop.f32.mrb[0].mxu0
    %v517 = vadd.f32 %v429, %v516
    %v518 = vpop.f32.mrb[0].mxu0
    %519 = vmatprep.mubr.bf16.mxu0 0
    %520 = vmatmul.mubr.bf16.gmra.mrb[0].mxu0 %v393
    %v521 = vpop.f32.mrb[0].mxu0
    %v522 = vadd.f32 %v429, %v521
    %v523 = vpop.f32.mrb[0].mxu0
    %v524 = vpop.f32.mrb[0].mxu0
    %v525 = vadd.f32 %v429, %v524
    %v526 = vpop.f32.mrb[0].mxu0
    %527 = vmatprep.mubr.bf16.mxu0 0
    %528 = vmatmul.mubr.bf16.gmra.mrb[0].mxu0 %v394
    %v529 = vpop.f32.mrb[0].mxu0
    %v530 = vadd.f32 %v429, %v529
    %v531 = vpop.f32.mrb[0].mxu0
    %v532 = vpop.f32.mrb[0].mxu0
    %v533 = vadd.f32 %v429, %v532
    %v534 = vpop.f32.mrb[0].mxu0
    %535 = vmatprep.mubr.bf16.mxu0 0
    %536 = vmatmul.mubr.bf16.gmra.mrb[0].mxu0 %v395
    %v537 = vpop.f32.mrb[0].mxu0
    %v538 = vadd.f32 %v429, %v537
    %v539 = vpop.f32.mrb[0].mxu0
    %v540 = vpop.f32.mrb[0].mxu0
    %v541 = vadd.f32 %v429, %v540
    %v542 = vpop.f32.mrb[0].mxu0
    %543 = vmatprep.mubr.bf16.mxu0 0
    %544 = vmatmul.mubr.bf16.gmra.mrb[0].mxu0 %v396
    %v545 = vpop.f32.mrb[0].mxu0
    %v546 = vadd.f32 %v429, %v545
    %v547 = vpop.f32.mrb[0].mxu0
    %v548 = vpop.f32.mrb[0].mxu0
    %v549 = vadd.f32 %v429, %v548
    %v550 = vpop.f32.mrb[0].mxu0
    %551 = vmatprep.mubr.bf16.mxu0 0
    %552 = vmatmul.mubr.bf16.gmra.mrb[0].mxu0 %v397
    %v553 = vpop.f32.mrb[0].mxu0
    %v554 = vadd.f32 %v429, %v553
    %v555 = vpop.f32.mrb[0].mxu0
    %v556 = vpop.f32.mrb[0].mxu0
    %v557 = vadd.f32 %v429, %v556
    %v558 = vpop.f32.mrb[0].mxu0
    %559 = vmatprep.mubr.bf16.mxu0 0
    %560 = vmatmul.mubr.bf16.gmra.mrb[0].mxu0 %v398
    %v561 = vpop.f32.mrb[0].mxu0
    %v562 = vadd.f32 %v429, %v561
    %v563 = vpop.f32.mrb[0].mxu0
    %v564 = vpop.f32.mrb[0].mxu0
    %v565 = vadd.f32 %v429, %v564
    %v566 = vpop.f32.mrb[0].mxu0
    %567 = vmatprep.mubr.bf16.mxu0 0
    %568 = vmatmul.mubr.bf16.gmra.mrb[0].mxu0 %v399
    %v569 = vpop.f32.mrb[0].mxu0
    %v570 = vadd.f32 %v429, %v569
    %v571 = vpop.f32.mrb[0].mxu0
    %v572 = vpop.f32.mrb[0].mxu0
    %v573 = vadd.f32 %v429, %v572
    %v574 = vpop.f32.mrb[0].mxu0
    %575 = vmatprep.mubr.bf16.mxu0 0
    %576 = vmatmul.mubr.bf16.gmra.mrb[0].mxu0 %v400
    %v577 = vpop.f32.mrb[0].mxu0
    %v578 = vadd.f32 %v429, %v577
    %v579 = vpop.f32.mrb[0].mxu0
    %v580 = vpop.f32.mrb[0].mxu0
    %v581 = vadd.f32 %v429, %v580
    %v582 = vpop.f32.mrb[0].mxu0
    %583 = vmatprep.mubr.bf16.mxu0 0
    %584 = vmatmul.mubr.bf16.gmra.mrb[0].mxu0 %v401
    %v585 = vpop.f32.mrb[0].mxu0
    %v586 = vadd.f32 %v429, %v585
    %v587 = vpop.f32.mrb[0].mxu0
    %v588 = vpop.f32.mrb[0].mxu0
    %v589 = vadd.f32 %v429, %v588
    %v590 = vpop.f32.mrb[0].mxu0
    %591 = vmatprep.mubr.bf16.mxu0 0
    %592 = vmatmul.mubr.bf16.gmra.mrb[0].mxu0 %v402
    %v593 = vpop.f32.mrb[0].mxu0
    %v594 = vadd.f32 %v429, %v593
    %v595 = vpop.f32.mrb[0].mxu0
    %v596 = vpop.f32.mrb[0].mxu0
    %v597 = vadd.f32 %v429, %v596
    %v598 = vpop.f32.mrb[0].mxu0
    %599 = vmatprep.mubr.bf16.mxu0 0
    %600 = vmatmul.mubr.bf16.gmra.mrb[0].mxu0 %v403
    %v601 = vpop.f32.mrb[0].mxu0
    %v602 = vadd.f32 %v429, %v601
    %v603 = vpop.f32.mrb[0].mxu0
    %v604 = vpop.f32.mrb[0].mxu0
    %v605 = vadd.f32 %v429, %v604
    %v606 = vpop.f32.mrb[0].mxu0
    %607 = vmatprep.mubr.bf16.mxu0 0
    %608 = vmatmul.mubr.bf16.gmra.mrb[0].mxu0 %v404
    %v609 = vpop.f32.mrb[0].mxu0
    %v610 = vadd.f32 %v429, %v609
    %v611 = vpop.f32.mrb[0].mxu0
    %v612 = vpop.f32.mrb[0].mxu0
    %v613 = vadd.f32 %v429, %v612
    %v614 = vpop.f32.mrb[0].mxu0
    %615 = vmatprep.mubr.bf16.mxu0 0
    %616 = vmatmul.mubr.bf16.gmra.mrb[0].mxu0 %v405
    %v617 = vpop.f32.mrb[0].mxu0
    %v618 = vadd.f32 %v429, %v617
    %v619 = vpop.f32.mrb[0].mxu0
    %v620 = vpop.f32.mrb[0].mxu0
    %v621 = vadd.f32 %v429, %v620
    %v622 = vpop.f32.mrb[0].mxu0
    %623 = vmatprep.mubr.bf16.mxu0 0
    %624 = vmatmul.mubr.bf16.gmra.mrb[0].mxu0 %v406
    %v625 = vpop.f32.mrb[0].mxu0
    %v626 = vadd.f32 %v429, %v625
    %v627 = vpop.f32.mrb[0].mxu0
    %v628 = vpop.f32.mrb[0].mxu0
    %v629 = vadd.f32 %v429, %v628
    %v630 = vpop.f32.mrb[0].mxu0
    %631 = vmatprep.mubr.bf16.mxu0 0
    %632 = vmatmul.mubr.bf16.gmra.mrb[0].mxu0 %v407
    %v633 = vpop.f32.mrb[0].mxu0
    %v634 = vadd.f32 %v429, %v633
    %v635 = vpop.f32.mrb[0].mxu0
    %v636 = vpop.f32.mrb[0].mxu0
    %v637 = vadd.f32 %v429, %v636
    %v638 = vpop.f32.mrb[0].mxu0
    %639 = vdwg.mxu0
    %v640 = vmul.f32 %v514, 0.5
    %v641 = vmul.f32 %v517, 0.5
    %v642 = vmul.f32 %v522, 0.5
    %v643 = vmul.f32 %v525, 0.5
    %v644 = vmul.f32 %v530, 0.5
    %v645 = vmul.f32 %v533, 0.5
    %v646 = vmul.f32 %v538, 0.5
    %v647 = vmul.f32 %v541, 0.5
    %v648 = vmul.f32 %v546, 0.5
    %v649 = vmul.f32 %v549, 0.5
    %v650 = vmul.f32 %v554, 0.5
    %v651 = vmul.f32 %v557, 0.5
    %v652 = vmul.f32 %v562, 0.5
    %v653 = vmul.f32 %v565, 0.5
    %v654 = vmul.f32 %v570, 0.5
    %v655 = vmul.f32 %v573, 0.5
    %v656 = vmul.f32 %v578, 0.5
    %v657 = vmul.f32 %v581, 0.5
    %v658 = vmul.f32 %v586, 0.5
    %v659 = vmul.f32 %v589, 0.5
    %v660 = vmul.f32 %v594, 0.5
    %v661 = vmul.f32 %v597, 0.5
    %v662 = vmul.f32 %v602, 0.5
    %v663 = vmul.f32 %v605, 0.5
    %v664 = vmul.f32 %v610, 0.5
    %v665 = vmul.f32 %v613, 0.5
    %v666 = vmul.f32 %v618, 0.5
    %v667 = vmul.f32 %v621, 0.5
    %v668 = vmul.f32 %v626, 0.5
    %v669 = vmul.f32 %v629, 0.5
    %v670 = vmul.f32 %v634, 0.5
    %v671 = vmul.f32 %v637, 0.5
    %v672 = vtanh.pop %v640
    %v673 = vtanh.pop %v641
    %v674 = vtanh.pop %v642
    %v675 = vtanh.pop %v643
    %v676 = vtanh.pop %v644
    %v677 = vtanh.pop %v645
    %v678 = vtanh.pop %v646
    %v679 = vtanh.pop %v647
    %v680 = vtanh.pop %v648
    %v681 = vtanh.pop %v649
    %v682 = vtanh.pop %v650
    %v683 = vtanh.pop %v651
    %v684 = vtanh.pop %v652
    %v685 = vtanh.pop %v653
    %v686 = vtanh.pop %v654
    %v687 = vtanh.pop %v655
    %v688 = vtanh.pop %v656
    %v689 = vtanh.pop %v657
    %v690 = vtanh.pop %v658
    %v691 = vtanh.pop %v659
    %v692 = vtanh.pop %v660
    %v693 = vtanh.pop %v661
    %v694 = vtanh.pop %v662
    %v695 = vtanh.pop %v663
    %v696 = vtanh.pop %v664
    %v697 = vtanh.pop %v665
    %v698 = vtanh.pop %v666
    %v699 = vtanh.pop %v667
    %v700 = vtanh.pop %v668
    %v701 = vtanh.pop %v669
    %v702 = vtanh.pop %v670
    %v703 = vtanh.pop %v671
    %v704 = vmul.f32 %v672, 0.5
    %v705 = vmul.f32 %v673, 0.5
    %v706 = vmul.f32 %v674, 0.5
    %v707 = vmul.f32 %v675, 0.5
    %v708 = vmul.f32 %v676, 0.5
    %v709 = vmul.f32 %v677, 0.5
    %v710 = vmul.f32 %v678, 0.5
    %v711 = vmul.f32 %v679, 0.5
    %v712 = vmul.f32 %v680, 0.5
    %v713 = vmul.f32 %v681, 0.5
    %v714 = vmul.f32 %v682, 0.5
    %v715 = vmul.f32 %v683, 0.5
    %v716 = vmul.f32 %v684, 0.5
    %v717 = vmul.f32 %v685, 0.5
    %v718 = vmul.f32 %v686, 0.5
    %v719 = vmul.f32 %v687, 0.5
    %v720 = vmul.f32 %v688, 0.5
    %v721 = vmul.f32 %v689, 0.5
    %v722 = vmul.f32 %v690, 0.5
    %v723 = vmul.f32 %v691, 0.5
    %v724 = vmul.f32 %v692, 0.5
    %v725 = vmul.f32 %v693, 0.5
    %v726 = vmul.f32 %v694, 0.5
    %v727 = vmul.f32 %v695, 0.5
    %v728 = vmul.f32 %v696, 0.5
    %v729 = vmul.f32 %v697, 0.5
    %v730 = vmul.f32 %v698, 0.5
    %v731 = vmul.f32 %v699, 0.5
    %v732 = vmul.f32 %v700, 0.5
    %v733 = vmul.f32 %v701, 0.5
    %v734 = vmul.f32 %v702, 0.5
    %v735 = vmul.f32 %v703, 0.5
    %v736 = vadd.f32 %v704, 0.5
    %v737 = vadd.f32 %v705, 0.5
    %v738 = vadd.f32 %v706, 0.5
    %v739 = vadd.f32 %v707, 0.5
    %v740 = vadd.f32 %v708, 0.5
    %v741 = vadd.f32 %v709, 0.5
    %v742 = vadd.f32 %v710, 0.5
    %v743 = vadd.f32 %v711, 0.5
    %v744 = vadd.f32 %v712, 0.5
    %v745 = vadd.f32 %v713, 0.5
    %v746 = vadd.f32 %v714, 0.5
    %v747 = vadd.f32 %v715, 0.5
    %v748 = vadd.f32 %v716, 0.5
    %v749 = vadd.f32 %v717, 0.5
    %v750 = vadd.f32 %v718, 0.5
    %v751 = vadd.f32 %v719, 0.5
    %v752 = vadd.f32 %v720, 0.5
    %v753 = vadd.f32 %v721, 0.5
    %v754 = vadd.f32 %v722, 0.5
    %v755 = vadd.f32 %v723, 0.5
    %v756 = vadd.f32 %v724, 0.5
    %v757 = vadd.f32 %v725, 0.5
    %v758 = vadd.f32 %v726, 0.5
    %v759 = vadd.f32 %v727, 0.5
    %v760 = vadd.f32 %v728, 0.5
    %v761 = vadd.f32 %v729, 0.5
    %v762 = vadd.f32 %v730, 0.5
    %v763 = vadd.f32 %v731, 0.5
    %v764 = vadd.f32 %v732, 0.5
    %v765 = vadd.f32 %v733, 0.5
    %v766 = vadd.f32 %v734, 0.5
    %v767 = vadd.f32 %v735, 0.5
    %v768 = vld [vmem:[#allocation2] sm:$0xff]
    %v769 = vld [vmem:[#allocation2 + $0x8] sm:$0xff]
    %v770 = vld [vmem:[#allocation2 + $0x10] sm:$0xff]
    %v771 = vld [vmem:[#allocation2 + $0x18] sm:$0xff]
    %v772 = vld [vmem:[#allocation2 + $0x20] sm:$0xff]
    %v773 = vld [vmem:[#allocation2 + $0x28] sm:$0xff]
    %v774 = vld [vmem:[#allocation2 + $0x30] sm:$0xff]
    %v775 = vld [vmem:[#allocation2 + $0x38] sm:$0xff]
    %v776 = vld [vmem:[#allocation2 + $0x40] sm:$0xff]
    %v777 = vld [vmem:[#allocation2 + $0x48] sm:$0xff]
    %v778 = vld [vmem:[#allocation2 + $0x50] sm:$0xff]
    %v779 = vld [vmem:[#allocation2 + $0x58] sm:$0xff]
    %v780 = vld [vmem:[#allocation2 + $0x60] sm:$0xff]
    %v781 = vld [vmem:[#allocation2 + $0x68] sm:$0xff]
    %v782 = vld [vmem:[#allocation2 + $0x70] sm:$0xff]
    %v783 = vld [vmem:[#allocation2 + $0x78] sm:$0xff]
    %v784 = vld [vmem:[#allocation2 + $0x80] sm:$0xff]
    %v785 = vld [vmem:[#allocation2 + $0x88] sm:$0xff]
    %v786 = vld [vmem:[#allocation2 + $0x90] sm:$0xff]
    %v787 = vld [vmem:[#allocation2 + $0x98] sm:$0xff]
    %v788 = vld [vmem:[#allocation2 + $0xa0] sm:$0xff]
    %v789 = vld [vmem:[#allocation2 + $0xa8] sm:$0xff]
    %v790 = vld [vmem:[#allocation2 + $0xb0] sm:$0xff]
    %v791 = vld [vmem:[#allocation2 + $0xb8] sm:$0xff]
    %v792 = vld [vmem:[#allocation2 + $0xc0] sm:$0xff]
    %v793 = vld [vmem:[#allocation2 + $0xc8] sm:$0xff]
    %v794 = vld [vmem:[#allocation2 + $0xd0] sm:$0xff]
    %v795 = vld [vmem:[#allocation2 + $0xd8] sm:$0xff]
    %v796 = vld [vmem:[#allocation2 + $0xe0] sm:$0xff]
    %v797 = vld [vmem:[#allocation2 + $0xe8] sm:$0xff]
    %v798 = vld [vmem:[#allocation2 + $0xf0] sm:$0xff]
    %v799 = vld [vmem:[#allocation2 + $0xf8] sm:$0xff]
    %v800 = vmul.f32 %v768, %v736
    %v801 = vmul.f32 %v769, %v737
    %v802 = vmul.f32 %v770, %v738
    %v803 = vmul.f32 %v771, %v739
    %v804 = vmul.f32 %v772, %v740
    %v805 = vmul.f32 %v773, %v741
    %v806 = vmul.f32 %v774, %v742
    %v807 = vmul.f32 %v775, %v743
    %v808 = vmul.f32 %v776, %v744
    %v809 = vmul.f32 %v777, %v745
    %v810 = vmul.f32 %v778, %v746
    %v811 = vmul.f32 %v779, %v747
    %v812 = vmul.f32 %v780, %v748
    %v813 = vmul.f32 %v781, %v749
    %v814 = vmul.f32 %v782, %v750
    %v815 = vmul.f32 %v783, %v751
    %v816 = vmul.f32 %v784, %v752
    %v817 = vmul.f32 %v785, %v753
    %v818 = vmul.f32 %v786, %v754
    %v819 = vmul.f32 %v787, %v755
    %v820 = vmul.f32 %v788, %v756
    %v821 = vmul.f32 %v789, %v757
    %v822 = vmul.f32 %v790, %v758
    %v823 = vmul.f32 %v791, %v759
    %v824 = vmul.f32 %v792, %v760
    %v825 = vmul.f32 %v793, %v761
    %v826 = vmul.f32 %v794, %v762
    %v827 = vmul.f32 %v795, %v763
    %v828 = vmul.f32 %v796, %v764
    %v829 = vmul.f32 %v797, %v765
    %v830 = vmul.f32 %v798, %v766
    %v831 = vmul.f32 %v799, %v767
    %832 = vst [vmem:[#allocation10] sm:$0xff] %v800
    %833 = vst [vmem:[#allocation10 + $0x8] sm:$0xff] %v801
    %834 = vst [vmem:[#allocation10 + $0x10] sm:$0xff] %v802
    %835 = vst [vmem:[#allocation10 + $0x18] sm:$0xff] %v803
    %836 = vst [vmem:[#allocation10 + $0x20] sm:$0xff] %v804
    %837 = vst [vmem:[#allocation10 + $0x28] sm:$0xff] %v805
    %838 = vst [vmem:[#allocation10 + $0x30] sm:$0xff] %v806
    %839 = vst [vmem:[#allocation10 + $0x38] sm:$0xff] %v807
    %840 = vst [vmem:[#allocation10 + $0x40] sm:$0xff] %v808
    %841 = vst [vmem:[#allocation10 + $0x48] sm:$0xff] %v809
    %842 = vst [vmem:[#allocation10 + $0x50] sm:$0xff] %v810
    %843 = vst [vmem:[#allocation10 + $0x58] sm:$0xff] %v811
    %844 = vst [vmem:[#allocation10 + $0x60] sm:$0xff] %v812
    %845 = vst [vmem:[#allocation10 + $0x68] sm:$0xff] %v813
    %846 = vst [vmem:[#allocation10 + $0x70] sm:$0xff] %v814
    %847 = vst [vmem:[#allocation10 + $0x78] sm:$0xff] %v815
    %848 = vst [vmem:[#allocation10 + $0x80] sm:$0xff] %v816
    %849 = vst [vmem:[#allocation10 + $0x88] sm:$0xff] %v817
    %850 = vst [vmem:[#allocation10 + $0x90] sm:$0xff] %v818
    %851 = vst [vmem:[#allocation10 + $0x98] sm:$0xff] %v819
    %852 = vst [vmem:[#allocation10 + $0xa0] sm:$0xff] %v820
    %853 = vst [vmem:[#allocation10 + $0xa8] sm:$0xff] %v821
    %854 = vst [vmem:[#allocation10 + $0xb0] sm:$0xff] %v822
    %855 = vst [vmem:[#allocation10 + $0xb8] sm:$0xff] %v823
    %856 = vst [vmem:[#allocation10 + $0xc0] sm:$0xff] %v824
    %857 = vst [vmem:[#allocation10 + $0xc8] sm:$0xff] %v825
    %858 = vst [vmem:[#allocation10 + $0xd0] sm:$0xff] %v826
    %859 = vst [vmem:[#allocation10 + $0xd8] sm:$0xff] %v827
    %860 = vst [vmem:[#allocation10 + $0xe0] sm:$0xff] %v828
    %861 = vst [vmem:[#allocation10 + $0xe8] sm:$0xff] %v829
    %862 = vst [vmem:[#allocation10 + $0xf0] sm:$0xff] %v830
    %863 = vst [vmem:[#allocation10 + $0xf8] sm:$0xff] %v831
    // Predicated region
    $region42: #{tpu_custom_call.1} parent=1 // pred_check
      _
    $region43: #{tpu_custom_call.1} parent=1 // pred_check_branch
      %865 = sbr.rel (0) target = $region45
    $region44: #{tpu_custom_call.1} parent=1 // pred_region
      %s867 = ssub.s32 4096, 4096
      %868 = vsyncadd [#allocation4], %s867
      %s869 = sshll.u32 [#allocation10], 4
      %s870 = int_to_ptr.vmem [resolvable:$true] %s869
      %875 = dma.vmem_to_hbm [thread:$0]  %s870, 4096, %s6, [#allocation4], 128, 128, 8
    $region45: #{tpu_custom_call.1} parent=1 // pred_fallthru
      _
    // Predicated region
    $region46: #{tpu_custom_call.1} parent=1 // pred_check
      _
    $region47: #{tpu_custom_call.1} parent=1 // pred_check_branch
      %877 = sbr.rel (0) target = $region49
    $region48: #{tpu_custom_call.1} parent=1 // pred_region
      %878 = dma.done [#allocation4], 4096
    $region49: #{tpu_custom_call.1} parent=1 // pred_fallthru
      _
    %879 = vsyncpa [#allocation3], 1
    %880 = vsyncpa [#allocation6], 1
    %881 = vsyncpa [#allocation9], 1
    %882 = vsyncpa [#allocation4], 1

</llo_original>
